<compile_context>
chip_gen: v7x
topology: tpu7x:2x2x1
jax: 0.10.0
libtpu: 0.0.40
codegen_flags: <defaults>
</compile_context>

<pallas_src>
import functools

import numpy as np
import jax
import jax.numpy as jnp
from jax import lax
from jax.experimental import pallas as pl
from jax.experimental.pallas import tpu as pltpu

_LANE = 128
_SUBLANE = 8


def _round_up(a, b):
    return ((a + b - 1) // b) * b


def _cdiv(a, b):
    return -(-a // b)


def _device_tiling():
    """Generation-aware (max_tile_rows, scoped-VMEM cap in bytes)."""
    try:
        kind = jax.devices()[0].device_kind.lower()
    except Exception:  # pragma: no cover - defensive
        kind = ""
    if "v5e" in kind or "v5 lite" in kind or "v5lite" in kind:
        # v5e: ~0.8 TB/s HBM; 2048-row tiles already make per-step DMA ~5 us.
        return 2048, 100 << 20
    if "v6" in kind:
        # v6e: 128 MiB physical VMEM; 4096-row tiles + temporaries fit easily.
        return 4096, 96 << 20
    # v7x (64 MiB physical per TC) and unknown chips: stay under 56 MiB scoped.
    return 4096, 56 << 20


def _gae_loss_kernel(*refs, tile_rows, total, needs_mask, with_surrogate):
    if with_surrogate:
        z_ref, x_ref, s2_ref, s3_ref, out_ref = refs
    else:
        z_ref, x_ref, out_ref = refs

    z = z_ref[...].astype(jnp.float32)
    x = x_ref[...].astype(jnp.float32)

    # Stable log-sigmoid identities (2 EUP transcendentals per element):
    #   log(sigmoid(z))     = min(z, 0) - log1p(exp(-|z|))
    #   log(1 - sigmoid(z)) = log(sigmoid(z)) - z
    softplus = jnp.log1p(jnp.exp(-jnp.abs(z)))
    log_sig = jnp.minimum(z, jnp.float32(0.0)) - softplus
    log_1m_sig = log_sig - z
    one_minus_x = jnp.float32(1.0) - x
    abc_elem = x * log_sig + one_minus_x * log_1m_sig

    if with_surrogate:
        s2 = s2_ref[...].astype(jnp.float32)
        s3 = s3_ref[...].astype(jnp.float32)
        # Horner / FMA-friendly surrogate:
        #   log(2) + z*((0.5 - x + s2) + z*(0.125 + s3))
        result = jnp.float32(np.log(2.0)) + z * (
            (jnp.float32(0.5) - x + s2) + z * (jnp.float32(0.125) + s3))
        # F.binary_cross_entropy clamps each log term at -100.
        neg100 = jnp.float32(-100.0)
        floss_elem = -(x * jnp.maximum(log_sig, neg100)
                       + one_minus_x * jnp.maximum(log_1m_sig, neg100))
        elems = (result, abc_elem, floss_elem)
    else:
        elems = (abc_elem,)

    def write(vals):
        # Per-block partial sums kept as lane-dense (8, 128) slabs; the tiny
        # cross-lane reduction happens in the wrapper.
        for c, v in enumerate(vals):
            out_ref[0, c] = jnp.sum(
                v.reshape(tile_rows // _SUBLANE, _SUBLANE, _LANE), axis=0)

    if needs_mask:
        # Padding / ragged tail lives entirely in the last block; every other
        # block takes the unmasked fast path.
        is_last = pl.program_id(0) == pl.num_programs(0) - 1

        @pl.when(is_last)
        def _():
            row_ids = lax.broadcasted_iota(jnp.int32, (tile_rows, _LANE), 0)
            lane_ids = lax.broadcasted_iota(jnp.int32, (tile_rows, _LANE), 1)
            flat_idx = (pl.program_id(0) * tile_rows + row_ids) * _LANE + lane_ids
            valid = flat_idx < total
            # jnp.where (not multiply): OOB rows of a ragged block may hold
            # garbage/NaN and 0*NaN would poison the sum.
            write(tuple(jnp.where(valid, v, jnp.float32(0.0)) for v in elems))

        @pl.when(jnp.logical_not(is_last))
        def _():
            write(elems)
    else:
        write(elems)


def gae_loss(z, x, sample1, sample2, sample3, *, compute_surrogate=True):
    """Returns ABC (what the PyTorch module returns).

    With compute_surrogate=True (default, full module semantics) the surrogate
    loss and Floss are also computed and printed via jax.debug.print.  With
    compute_surrogate=False only ABC is computed: sample2/sample3 are never
    read, roughly halving HBM traffic.
    """
    del sample1  # unused in the reference module as well
    assert z.shape == x.shape == sample2.shape == sample3.shape
    total = int(np.prod(z.shape))
    assert total > 0

    rows = _cdiv(total, _LANE)
    rows8 = _round_up(rows, _SUBLANE)            # minimal (8,128) layout multiple
    padded_total = rows8 * _LANE
    pad_elems = padded_total - total

    max_tile_rows, vmem_cap = _device_tiling()
    tile_rows = min(max_tile_rows, rows8)
    # Prefer >= 2 blocks when there is enough data so the "parallel" grid axis
    # can shard across both TensorCores on v7x.
    if rows8 >= 2 * _SUBLANE and _cdiv(rows8, tile_rows) < 2:
        tile_rows = _round_up(_cdiv(rows8, 2), _SUBLANE)
    num_blocks = _cdiv(rows8, tile_rows)
    ragged = num_blocks * tile_rows != rows8
    needs_mask = (pad_elems != 0) or ragged

    inputs = (z, x, sample2, sample3) if compute_surrogate else (z, x)
    n_out_ch = 3 if compute_surrogate else 1

    def flat(a):
        a = a.reshape(-1)
        if pad_elems:
            a = jnp.pad(a, (0, pad_elems))       # <= 1023 elems, never tile-sized
        return a.reshape(rows8, _LANE)

    kernel = functools.partial(
        _gae_loss_kernel, tile_rows=tile_rows, total=total,
        needs_mask=needs_mask, with_surrogate=compute_surrogate)

    in_spec = pl.BlockSpec((tile_rows, _LANE), lambda i: (i, 0))
    out_spec = pl.BlockSpec((1, n_out_ch, _SUBLANE, _LANE), lambda i: (i, 0, 0, 0))
    out_shape = jax.ShapeDtypeStruct((num_blocks, n_out_ch, _SUBLANE, _LANE),
                                     jnp.float32)

    # VMEM budget: double-buffered inputs + double-buffered (tiny) outputs +
    # a generous allowance for f32 temporaries that spill to VMEM at big tiles.
    in_bytes = 2 * tile_rows * _LANE * sum(a.dtype.itemsize for a in inputs)
    out_bytes = 2 * n_out_ch * _SUBLANE * _LANE * 4
    interm_bytes = 16 * tile_rows * _LANE * 4
    vmem_limit = min(vmem_cap,
                     max(16 << 20, in_bytes + out_bytes + interm_bytes + (2 << 20)))

    partials = pl.pallas_call(
        kernel,
        out_shape=out_shape,
        grid=(num_blocks,),
        in_specs=[in_spec] * len(inputs),
        out_specs=out_spec,
        compiler_params=pltpu.CompilerParams(
            dimension_semantics=("parallel",),   # independent partials -> megacore OK
            vmem_limit_bytes=int(vmem_limit)),
    )(*[flat(a) for a in inputs])

    sums = jnp.sum(partials, axis=(0, 2, 3))
    inv_n = jnp.float32(1.0 / total)

    if compute_surrogate:
        loss = sums[0] * inv_n
        abc = -(sums[1] * inv_n)
        floss = sums[2] * inv_n
        # jit-safe equivalents of the module's print(loss) / print(Floss).
        jax.debug.print("GAE surrogate loss = {l}", l=loss)
        jax.debug.print("Floss (BCE)        = {f}", f=floss)
        # TODO(synk): host-side loss_history/Floss_history/Loss_history list
        # appends from the PyTorch module have no jit-safe equivalent; omitted.
        return abc

    return -(sums[0] * inv_n)


def _reference(z, x, sample2, sample3):
    result = np.log(2.0) + (0.5 - x + sample2) * z + (0.125 + sample3) * z ** 2
    sig = jax.nn.sigmoid(z)
    abc = -jnp.mean(x * jnp.log(sig) + (1 - x) * jnp.log(1 - sig))
    return jnp.mean(result), abc


if __name__ == "__main__":
    key = jax.random.PRNGKey(0)
    k1, k2, k3, k4, k5 = jax.random.split(key, 5)
    shape = (2, 4, 16, 16)  # NCHW, matches the module's conv-style inputs
    z = jax.random.normal(k1, shape, dtype=jnp.float32)
    x = jax.random.uniform(k2, shape, dtype=jnp.float32)             # targets in (0, 1)
    sample1 = jax.random.normal(k3, shape, dtype=jnp.float32) * 0.1  # unused, as in the module
    sample2 = jax.random.normal(k4, shape, dtype=jnp.float32) * 0.1
    sample3 = jax.random.normal(k5, shape, dtype=jnp.float32) * 0.1

    abc = jax.block_until_ready(gae_loss(z, x, sample1, sample2, sample3))
    abc_fast = jax.block_until_ready(
        gae_loss(z, x, sample1, sample2, sample3, compute_surrogate=False))

    ref_loss, ref_abc = _reference(z, x, sample2, sample3)
    assert np.allclose(np.asarray(abc), np.asarray(ref_abc), rtol=1e-5, atol=1e-5)
    assert np.allclose(np.asarray(abc_fast), np.asarray(ref_abc), rtol=1e-5, atol=1e-5)

    print("KERNEL_OK")
</pallas_src>

<mosaic_0001>
module attributes {stable_mosaic.version = 11 : i64} {
  func.func @_gae_loss_kernel(%arg0: i32, %arg1: memref<8x128xf32, #tpu.memory_space<vmem>>, %arg2: memref<8x128xf32, #tpu.memory_space<vmem>>, %arg3: memref<8x128xf32, #tpu.memory_space<vmem>>, %arg4: memref<8x128xf32, #tpu.memory_space<vmem>>, %arg5: memref<1x3x8x128xf32, #tpu.memory_space<vmem>>) attributes {dimension_semantics = [#tpu.dimension_semantics<parallel>], iteration_bounds = array<i64: 2>, scalar_prefetch = 0 : i64, scratch_operands = 0 : i64, tpu.core_type = #tpu.core_type<tc>, window_params = [{transform_indices = @transform_0, window_bounds = array<i64: 8, 128>}, {transform_indices = @transform_1, window_bounds = array<i64: 8, 128>}, {transform_indices = @transform_2, window_bounds = array<i64: 8, 128>}, {transform_indices = @transform_3, window_bounds = array<i64: 8, 128>}, {transform_indices = @transform_4, window_bounds = array<i64: 1, 3, 8, 128>}]} {
    %c0 = arith.constant 0 : index
    %c0_0 = arith.constant 0 : index
    %0 = vector.load %arg1[%c0, %c0_0] : memref<8x128xf32, #tpu.memory_space<vmem>>, vector<8x128xf32>
    %c0_1 = arith.constant 0 : index
    %c0_2 = arith.constant 0 : index
    %1 = vector.load %arg2[%c0_1, %c0_2] : memref<8x128xf32, #tpu.memory_space<vmem>>, vector<8x128xf32>
    %2 = math.absf %0 : vector<8x128xf32>
    %cst = arith.constant 0.000000e+00 : f32
    %3 = vector.broadcast %cst : f32 to vector<8x128xf32>
    %4 = arith.subf %3, %2 : vector<8x128xf32>
    %5 = math.exp %4 : vector<8x128xf32>
    %6 = math.log1p %5 : vector<8x128xf32>
    %cst_3 = arith.constant 0.000000e+00 : f32
    %7 = vector.broadcast %cst_3 : f32 to vector<8x128xf32>
    %8 = arith.minimumf %0, %7 : vector<8x128xf32>
    %9 = arith.subf %8, %6 : vector<8x128xf32>
    %10 = arith.subf %9, %0 : vector<8x128xf32>
    %cst_4 = arith.constant 1.000000e+00 : f32
    %11 = vector.broadcast %cst_4 : f32 to vector<8x128xf32>
    %12 = arith.subf %11, %1 : vector<8x128xf32>
    %13 = arith.mulf %1, %9 : vector<8x128xf32>
    %14 = arith.mulf %12, %10 : vector<8x128xf32>
    %15 = arith.addf %13, %14 : vector<8x128xf32>
    %c0_5 = arith.constant 0 : index
    %c0_6 = arith.constant 0 : index
    %16 = vector.load %arg3[%c0_5, %c0_6] : memref<8x128xf32, #tpu.memory_space<vmem>>, vector<8x128xf32>
    %c0_7 = arith.constant 0 : index
    %c0_8 = arith.constant 0 : index
    %17 = vector.load %arg4[%c0_7, %c0_8] : memref<8x128xf32, #tpu.memory_space<vmem>>, vector<8x128xf32>
    %cst_9 = arith.constant 5.000000e-01 : f32
    %18 = vector.broadcast %cst_9 : f32 to vector<8x128xf32>
    %19 = arith.subf %18, %1 : vector<8x128xf32>
    %20 = arith.addf %19, %16 : vector<8x128xf32>
    %cst_10 = arith.constant 1.250000e-01 : f32
    %21 = vector.broadcast %cst_10 : f32 to vector<8x128xf32>
    %22 = arith.addf %21, %17 : vector<8x128xf32>
    %23 = arith.mulf %0, %22 : vector<8x128xf32>
    %24 = arith.addf %20, %23 : vector<8x128xf32>
    %25 = arith.mulf %0, %24 : vector<8x128xf32>
    %cst_11 = arith.constant 0.693147182 : f32
    %26 = vector.broadcast %cst_11 : f32 to vector<8x128xf32>
    %27 = arith.addf %26, %25 : vector<8x128xf32>
    %cst_12 = arith.constant -1.000000e+02 : f32
    %28 = vector.broadcast %cst_12 : f32 to vector<8x128xf32>
    %29 = arith.maximumf %9, %28 : vector<8x128xf32>
    %30 = arith.mulf %1, %29 : vector<8x128xf32>
    %cst_13 = arith.constant -1.000000e+02 : f32
    %31 = vector.broadcast %cst_13 : f32 to vector<8x128xf32>
    %32 = arith.maximumf %10, %31 : vector<8x128xf32>
    %33 = arith.mulf %12, %32 : vector<8x128xf32>
    %34 = arith.addf %30, %33 : vector<8x128xf32>
    %cst_14 = arith.constant 0.000000e+00 : f32
    %35 = vector.broadcast %cst_14 : f32 to vector<8x128xf32>
    %36 = arith.subf %35, %34 : vector<8x128xf32>
    %37 = vector.shape_cast %27 : vector<8x128xf32> to vector<1x8x128xf32>
    %cst_15 = arith.constant dense<0.000000e+00> : vector<8x128xf32>
    %38 = vector.multi_reduction <add>, %37, %cst_15 [0] : vector<1x8x128xf32> to vector<8x128xf32>
    %c0_16 = arith.constant 0 : index
    %c0_17 = arith.constant 0 : index
    %c0_18 = arith.constant 0 : index
    %c0_19 = arith.constant 0 : index
    %39 = vector.load %arg5[%c0_16, %c0_17, %c0_18, %c0_19] : memref<1x3x8x128xf32, #tpu.memory_space<vmem>>, vector<1x1x8x128xf32>
    %40 = vector.shape_cast %39 : vector<1x1x8x128xf32> to vector<8x128xf32>
    %41 = vector.shape_cast %38 : vector<8x128xf32> to vector<1x1x8x128xf32>
    tpu.vector_store %arg5[%c0_16, %c0_17, %c0_18, %c0_19], %41 {strides = array<i32>} : memref<1x3x8x128xf32, #tpu.memory_space<vmem>>, vector<1x1x8x128xf32>,
    %42 = vector.shape_cast %15 : vector<8x128xf32> to vector<1x8x128xf32>
    %cst_20 = arith.constant dense<0.000000e+00> : vector<8x128xf32>
    %43 = vector.multi_reduction <add>, %42, %cst_20 [0] : vector<1x8x128xf32> to vector<8x128xf32>
    %c0_21 = arith.constant 0 : index
    %c1 = arith.constant 1 : index
    %c0_22 = arith.constant 0 : index
    %c0_23 = arith.constant 0 : index
    %44 = vector.load %arg5[%c0_21, %c1, %c0_22, %c0_23] : memref<1x3x8x128xf32, #tpu.memory_space<vmem>>, vector<1x1x8x128xf32>
    %45 = vector.shape_cast %44 : vector<1x1x8x128xf32> to vector<8x128xf32>
    %46 = vector.shape_cast %43 : vector<8x128xf32> to vector<1x1x8x128xf32>
    tpu.vector_store %arg5[%c0_21, %c1, %c0_22, %c0_23], %46 {strides = array<i32>} : memref<1x3x8x128xf32, #tpu.memory_space<vmem>>, vector<1x1x8x128xf32>,
    %47 = vector.shape_cast %36 : vector<8x128xf32> to vector<1x8x128xf32>
    %cst_24 = arith.constant dense<0.000000e+00> : vector<8x128xf32>
    %48 = vector.multi_reduction <add>, %47, %cst_24 [0] : vector<1x8x128xf32> to vector<8x128xf32>
    %c0_25 = arith.constant 0 : index
    %c2 = arith.constant 2 : index
    %c0_26 = arith.constant 0 : index
    %c0_27 = arith.constant 0 : index
    %49 = vector.load %arg5[%c0_25, %c2, %c0_26, %c0_27] : memref<1x3x8x128xf32, #tpu.memory_space<vmem>>, vector<1x1x8x128xf32>
    %50 = vector.shape_cast %49 : vector<1x1x8x128xf32> to vector<8x128xf32>
    %51 = vector.shape_cast %48 : vector<8x128xf32> to vector<1x1x8x128xf32>
    tpu.vector_store %arg5[%c0_25, %c2, %c0_26, %c0_27], %51 {strides = array<i32>} : memref<1x3x8x128xf32, #tpu.memory_space<vmem>>, vector<1x1x8x128xf32>,
    return
  }
  func.func @transform_0(%arg0: i32) -> (i32, i32) {
    %c0_i32 = arith.constant 0 : i32
    %c0_i32_0 = arith.constant 0 : i32
    return %arg0, %c0_i32 : i32, i32
  }
  func.func @transform_1(%arg0: i32) -> (i32, i32) {
    %c0_i32 = arith.constant 0 : i32
    %c0_i32_0 = arith.constant 0 : i32
    return %arg0, %c0_i32 : i32, i32
  }
  func.func @transform_2(%arg0: i32) -> (i32, i32) {
    %c0_i32 = arith.constant 0 : i32
    %c0_i32_0 = arith.constant 0 : i32
    return %arg0, %c0_i32 : i32, i32
  }
  func.func @transform_3(%arg0: i32) -> (i32, i32) {
    %c0_i32 = arith.constant 0 : i32
    %c0_i32_0 = arith.constant 0 : i32
    return %arg0, %c0_i32 : i32, i32
  }
  func.func @transform_4(%arg0: i32) -> (i32, i32, i32, i32) {
    %c0_i32 = arith.constant 0 : i32
    %c0_i32_0 = arith.constant 0 : i32
    %c0_i32_1 = arith.constant 0 : i32
    %c0_i32_2 = arith.constant 0 : i32
    return %arg0, %c0_i32, %c0_i32_0, %c0_i32_1 : i32, i32, i32, i32
  }
}

</mosaic_0001>

<llo_original>
// kernel: tpu_custom_call.1
$region0: #{tpu_custom_call.1}
  #allocation0 [shape = 'u32[]', space=smem, size = 0x4, offset = 0x4, fixed_abs, tag = 'smem constant byte address 0x4 - core index']
  #allocation1 [shape = 'u32[144,128]{1,0:T(1,128)}', space=vmem, size = 0x12000, scoped, tag = 'internal scratch']
  %s0 = inlined_call_operand.hbm [shape: f32[16,128], index: 0, kind: input, shape index: {}]
  %s1 = inlined_call_operand.hbm [shape: f32[16,128], index: 1, kind: input, shape index: {}]
  %s2 = inlined_call_operand.hbm [shape: f32[16,128], index: 2, kind: input, shape index: {}]
  %s3 = inlined_call_operand.hbm [shape: f32[16,128], index: 3, kind: input, shape index: {}]
  %s4 = inlined_call_operand.hbm [shape: f32[2,3,8,128], index: 4, kind: output, shape index: {}]
  %s5 = sld [smem:[#allocation0]]
  $region65: #{tpu_custom_call.1} parent=0
    _
  %s7 = ssub.s32 1, %s5
  %s8 = scalar_select 0, %s7, %s5
  $region1: #{tpu_custom_call.1} parent=0
    #allocation2 [shape = 'u8[8192]{0}', space=vmem, size = 0x2000, scoped, tag = 'input window, operand 0']
    #allocation3 [shape = 's32[2]{0}', space=sflag, size = 0x8, scoped, tag = 'scoped memory for tpu_custom_call.1']
    #allocation4 [shape = 's32[2]{0}', space=sflag, size = 0x8, scoped, tag = 'scoped memory for tpu_custom_call.1']
    #allocation5 [shape = 'u8[8192]{0}', space=vmem, size = 0x2000, scoped, tag = 'input window, operand 1']
    #allocation6 [shape = 's32[2]{0}', space=sflag, size = 0x8, scoped, tag = 'scoped memory for tpu_custom_call.1']
    #allocation7 [shape = 'u8[8192]{0}', space=vmem, size = 0x2000, scoped, tag = 'input window, operand 2']
    #allocation8 [shape = 'u8[8192]{0}', space=vmem, size = 0x2000, scoped, tag = 'input window, operand 3']
    #allocation9 [shape = 's32[2]{0}', space=sflag, size = 0x8, scoped, tag = 'scoped memory for tpu_custom_call.1']
    #allocation10 [shape = 'u8[24576]{0}', space=vmem, size = 0x6000, scoped, tag = 'output window, operand 0']
    %9 = vsyncpa [#allocation3], 0
    %s10 = scalar_lea.sflag [#allocation3], 1
    %11 = vsyncpa %s10, 0
    %12 = vsyncpa [#allocation6], 0
    %s13 = scalar_lea.sflag [#allocation6], 1
    %14 = vsyncpa %s13, 0
    %15 = vsyncpa [#allocation9], 0
    %s16 = scalar_lea.sflag [#allocation9], 1
    %17 = vsyncpa %s16, 0
    %18 = vsyncpa [#allocation4], 0
    %s19 = scalar_lea.sflag [#allocation4], 1
    %20 = vsyncpa %s19, 0
    loop: start=0, step=1, limit=4
    $region2: #{tpu_custom_call.1} parent=1 // loop_pre_header
      _
    $region3: #{tpu_custom_call.1} parent=1 // loop_header
      %s22 = sphi 0, %s26
      %p23 = scmp.ge.s32.totalorder %s22, 4
      %s32 = sphi 0, %s34
      %s35 = sphi 0, %s32
      %s36 = sphi 0, %s35
      %s52 = sphi 0, %s36
      %s58 = sphi 0, %s60
      %s61 = sphi 0, %s58
      %s62 = sphi 0, %s61
      %s78 = sphi 0, %s62
      %s84 = sphi 0, %s86
      %s87 = sphi 0, %s84
      %s88 = sphi 0, %s87
      %s104 = sphi 0, %s88
      %s110 = sphi 0, %s112
      %s113 = sphi 0, %s110
      %s114 = sphi 0, %s113
      %s130 = sphi 0, %s114
      %s136 = sphi 0, %s138
      %s139 = sphi 0, %s136
      %s140 = sphi 0, %s139
      %s156 = sphi 0, %s140
    $region4: #{tpu_custom_call.1} parent=1 // loop_header_branch
      %25 = sbr.rel (%p23) target = $region8
    $region5: #{tpu_custom_call.1} parent=1 // loop_body
      %s27 = ssub.s32 %s22, 1
      %s28 = ssub.s32 %s22, 2
      %s29 = sadd.s32 %s22, 1
      %s30 = ssub.s32 %s22, %s29
      %p31 = scmp.eq.s32.totalorder %s30, 0
      %s33 = sadd.s32 %s32, 1
      %s34 = scalar_select %p31, %s32, %s33
      %p37 = pneg %p31
      %p38 = scmp.eq.s32.totalorder %s22, 1
      %p39 = por %p37, %p38
      %p40 = scmp.ne.s32.totalorder %s32, %s35
      %p41 = scmp.eq.s32.totalorder %s22, 0
      %p42 = por %p40, %p41
      %p43 = scmp.ne.s32.totalorder %s32, %s35
      %p44 = scmp.eq.s32.totalorder %s27, 1
      %p45 = por %p43, %p44
      %p46 = scmp.ne.s32.totalorder %s35, %s36
      %p47 = scmp.eq.s32.totalorder %s27, 0
      %p48 = por %p46, %p47
      %p49 = scmp.ne.s32.totalorder %s35, %s36
      %p50 = scmp.eq.s32.totalorder %s28, 1
      %p51 = por %p49, %p50
      %p53 = scmp.ne.s32.totalorder %s36, %s52
      %p54 = scmp.eq.s32.totalorder %s28, 0
      %p55 = por %p53, %p54
      %s56 = ssub.s32 %s22, %s29
      %p57 = scmp.eq.s32.totalorder %s56, 0
      %s59 = sadd.s32 %s58, 1
      %s60 = scalar_select %p57, %s58, %s59
      %p63 = pneg %p57
      %p64 = scmp.eq.s32.totalorder %s22, 1
      %p65 = por %p63, %p64
      %p66 = scmp.ne.s32.totalorder %s58, %s61
      %p67 = scmp.eq.s32.totalorder %s22, 0
      %p68 = por %p66, %p67
      %p69 = scmp.ne.s32.totalorder %s58, %s61
      %p70 = scmp.eq.s32.totalorder %s27, 1
      %p71 = por %p69, %p70
      %p72 = scmp.ne.s32.totalorder %s61, %s62
      %p73 = scmp.eq.s32.totalorder %s27, 0
      %p74 = por %p72, %p73
      %p75 = scmp.ne.s32.totalorder %s61, %s62
      %p76 = scmp.eq.s32.totalorder %s28, 1
      %p77 = por %p75, %p76
      %p79 = scmp.ne.s32.totalorder %s62, %s78
      %p80 = scmp.eq.s32.totalorder %s28, 0
      %p81 = por %p79, %p80
      %s82 = ssub.s32 %s22, %s29
      %p83 = scmp.eq.s32.totalorder %s82, 0
      %s85 = sadd.s32 %s84, 1
      %s86 = scalar_select %p83, %s84, %s85
      %p89 = pneg %p83
      %p90 = scmp.eq.s32.totalorder %s22, 1
      %p91 = por %p89, %p90
      %p92 = scmp.ne.s32.totalorder %s84, %s87
      %p93 = scmp.eq.s32.totalorder %s22, 0
      %p94 = por %p92, %p93
      %p95 = scmp.ne.s32.totalorder %s84, %s87
      %p96 = scmp.eq.s32.totalorder %s27, 1
      %p97 = por %p95, %p96
      %p98 = scmp.ne.s32.totalorder %s87, %s88
      %p99 = scmp.eq.s32.totalorder %s27, 0
      %p100 = por %p98, %p99
      %p101 = scmp.ne.s32.totalorder %s87, %s88
      %p102 = scmp.eq.s32.totalorder %s28, 1
      %p103 = por %p101, %p102
      %p105 = scmp.ne.s32.totalorder %s88, %s104
      %p106 = scmp.eq.s32.totalorder %s28, 0
      %p107 = por %p105, %p106
      %s108 = ssub.s32 %s22, %s29
      %p109 = scmp.eq.s32.totalorder %s108, 0
      %s111 = sadd.s32 %s110, 1
      %s112 = scalar_select %p109, %s110, %s111
      %p115 = pneg %p109
      %p116 = scmp.eq.s32.totalorder %s22, 1
      %p117 = por %p115, %p116
      %p118 = scmp.ne.s32.totalorder %s110, %s113
      %p119 = scmp.eq.s32.totalorder %s22, 0
      %p120 = por %p118, %p119
      %p121 = scmp.ne.s32.totalorder %s110, %s113
      %p122 = scmp.eq.s32.totalorder %s27, 1
      %p123 = por %p121, %p122
      %p124 = scmp.ne.s32.totalorder %s113, %s114
      %p125 = scmp.eq.s32.totalorder %s27, 0
      %p126 = por %p124, %p125
      %p127 = scmp.ne.s32.totalorder %s113, %s114
      %p128 = scmp.eq.s32.totalorder %s28, 1
      %p129 = por %p127, %p128
      %p131 = scmp.ne.s32.totalorder %s114, %s130
      %p132 = scmp.eq.s32.totalorder %s28, 0
      %p133 = por %p131, %p132
      %s134 = ssub.s32 %s22, %s29
      %p135 = scmp.eq.s32.totalorder %s134, 0
      %s137 = sadd.s32 %s136, 1
      %s138 = scalar_select %p135, %s136, %s137
      %p141 = pneg %p135
      %p142 = scmp.eq.s32.totalorder %s22, 1
      %p143 = por %p141, %p142
      %p144 = scmp.ne.s32.totalorder %s136, %s139
      %p145 = scmp.eq.s32.totalorder %s22, 0
      %p146 = por %p144, %p145
      %p147 = scmp.ne.s32.totalorder %s136, %s139
      %p148 = scmp.eq.s32.totalorder %s27, 1
      %p149 = por %p147, %p148
      %p150 = scmp.ne.s32.totalorder %s139, %s140
      %p151 = scmp.eq.s32.totalorder %s27, 0
      %p152 = por %p150, %p151
      %p153 = scmp.ne.s32.totalorder %s139, %s140
      %p154 = scmp.eq.s32.totalorder %s28, 1
      %p155 = por %p153, %p154
      %p157 = scmp.ne.s32.totalorder %s140, %s156
      %p158 = scmp.eq.s32.totalorder %s28, 0
      %p159 = por %p157, %p158
      %p160 = scmp.le.s32.totalorder 1, %s22
      %p161 = scmp.lt.s32.totalorder %s22, 3
      %p162 = pnand %p160, %p161
      %p163 = pneg %p162
      // Predicated region
      $region9: #{tpu_custom_call.1} parent=5 // pred_check
        _
      $region10: #{tpu_custom_call.1} parent=5 // pred_check_branch
        %165 = sbr.rel (%p162) target = $region12
      $region11: #{tpu_custom_call.1} parent=5 // pred_region
        %s166 = ssub.s32 %s22, 1
      $region12: #{tpu_custom_call.1} parent=5 // pred_fallthru
        _
      %p167 = scmp.lt.s32.totalorder %s22, 2
      // Predicated region
      $region13: #{tpu_custom_call.1} parent=5 // pred_check
        %p168 = pneg %p167
      $region14: #{tpu_custom_call.1} parent=5 // pred_check_branch
        %170 = sbr.rel (%p168) target = $region16
      $region15: #{tpu_custom_call.1} parent=5 // pred_region
        // Predicated region
        $region17: #{tpu_custom_call.1} parent=15 // pred_check
          %p171 = pneg %p42
        $region18: #{tpu_custom_call.1} parent=15 // pred_check_branch
          %173 = sbr.rel (%p171) target = $region20
        $region19: #{tpu_custom_call.1} parent=15 // pred_region
          %s174 = sand.u32 %s32, 1
          %s175 = scalar_lea.sflag [#allocation3], %s174
          %s176 = sand.u32 %s32, 1
          %s177 = smul.addr %s176, 8
          %s178 = scalar_lea.vmem [#allocation2], %s177
          %s180 = ssub.s32 128, 128
          %181 = vsyncadd %s175, %s180
          %s182 = smul.addr %s22, 128
          %s183 = scalar_lea.hbm %s0, %s182
          %s185 = sshll.u32 %s178, 4
          %s186 = int_to_ptr.vmem [resolvable:$true] %s185
          %188 = dma.hbm_to_vmem [thread:$0]  %s183, 128, %s186, %s175
        $region20: #{tpu_custom_call.1} parent=15 // pred_fallthru
          _
        // Predicated region
        $region21: #{tpu_custom_call.1} parent=15 // pred_check
          %p189 = pneg %p68
        $region22: #{tpu_custom_call.1} parent=15 // pred_check_branch
          %191 = sbr.rel (%p189) target = $region24
        $region23: #{tpu_custom_call.1} parent=15 // pred_region
          %s192 = sand.u32 %s22, 1
          %s193 = scalar_lea.sflag [#allocation6], %s192
          %s194 = sand.u32 %s58, 1
          %s195 = smul.addr %s194, 8
          %s196 = scalar_lea.vmem [#allocation5], %s195
          %s198 = ssub.s32 128, 128
          %199 = vsyncadd %s193, %s198
          %s200 = smul.addr %s22, 128
          %s201 = scalar_lea.hbm %s1, %s200
          %s203 = sshll.u32 %s196, 4
          %s204 = int_to_ptr.vmem [resolvable:$true] %s203
          %206 = dma.hbm_to_vmem [thread:$0]  %s201, 128, %s204, %s193
        $region24: #{tpu_custom_call.1} parent=15 // pred_fallthru
          _
        // Predicated region
        $region25: #{tpu_custom_call.1} parent=15 // pred_check
          %p207 = pneg %p94
        $region26: #{tpu_custom_call.1} parent=15 // pred_check_branch
          %209 = sbr.rel (%p207) target = $region28
        $region27: #{tpu_custom_call.1} parent=15 // pred_region
          %s210 = sand.u32 %s22, 1
          %s211 = scalar_lea.sflag [#allocation6], %s210
          %s212 = sand.u32 %s84, 1
          %s213 = smul.addr %s212, 8
          %s214 = scalar_lea.vmem [#allocation7], %s213
          %s216 = ssub.s32 128, 128
          %217 = vsyncadd %s211, %s216
          %s218 = smul.addr %s22, 128
          %s219 = scalar_lea.hbm %s2, %s218
          %s221 = sshll.u32 %s214, 4
          %s222 = int_to_ptr.vmem [resolvable:$true] %s221
          %224 = dma.hbm_to_vmem [thread:$0]  %s219, 128, %s222, %s211
        $region28: #{tpu_custom_call.1} parent=15 // pred_fallthru
          _
        // Predicated region
        $region29: #{tpu_custom_call.1} parent=15 // pred_check
          %p225 = pneg %p120
        $region30: #{tpu_custom_call.1} parent=15 // pred_check_branch
          %227 = sbr.rel (%p225) target = $region32
        $region31: #{tpu_custom_call.1} parent=15 // pred_region
          %s228 = sand.u32 %s110, 1
          %s229 = scalar_lea.sflag [#allocation9], %s228
          %s230 = sand.u32 %s110, 1
          %s231 = smul.addr %s230, 8
          %s232 = scalar_lea.vmem [#allocation8], %s231
          %s234 = ssub.s32 128, 128
          %235 = vsyncadd %s229, %s234
          %s236 = smul.addr %s22, 128
          %s237 = scalar_lea.hbm %s3, %s236
          %s239 = sshll.u32 %s232, 4
          %s240 = int_to_ptr.vmem [resolvable:$true] %s239
          %242 = dma.hbm_to_vmem [thread:$0]  %s237, 128, %s240, %s229
        $region32: #{tpu_custom_call.1} parent=15 // pred_fallthru
          _
      $region16: #{tpu_custom_call.1} parent=5 // pred_fallthru
        _
      %p243 = scmp.le.s32.totalorder 1, %s22
      %p244 = scmp.lt.s32.totalorder %s22, 3
      %p245 = pnand %p243, %p244
      %p246 = pneg %p245
      // Predicated region
      $region33: #{tpu_custom_call.1} parent=5 // pred_check
        _
      $region34: #{tpu_custom_call.1} parent=5 // pred_check_branch
        %248 = sbr.rel (%p245) target = $region36
      $region35: #{tpu_custom_call.1} parent=5 // pred_region
        %s249 = ssub.s32 %s22, 1
        %s250 = sand.u32 %s35, 1
        %s251 = scalar_lea.sflag [#allocation3], %s250
        %s252 = sand.u32 %s35, 1
        %s253 = smul.addr %s252, 8
        %s254 = scalar_lea.vmem [#allocation2], %s253
        // Predicated region
        $region37: #{tpu_custom_call.1} parent=35 // pred_check
          %p255 = pneg %p48
        $region38: #{tpu_custom_call.1} parent=35 // pred_check_branch
          %257 = sbr.rel (%p255) target = $region40
        $region39: #{tpu_custom_call.1} parent=35 // pred_region
          %258 = dma.done %s251, 128
        $region40: #{tpu_custom_call.1} parent=35 // pred_fallthru
          _
        %s259 = sand.u32 %s27, 1
        %s260 = scalar_lea.sflag [#allocation6], %s259
        %s261 = sand.u32 %s61, 1
        %s262 = smul.addr %s261, 8
        %s263 = scalar_lea.vmem [#allocation5], %s262
        // Predicated region
        $region41: #{tpu_custom_call.1} parent=35 // pred_check
          %p264 = pneg %p74
        $region42: #{tpu_custom_call.1} parent=35 // pred_check_branch
          %266 = sbr.rel (%p264) target = $region44
        $region43: #{tpu_custom_call.1} parent=35 // pred_region
          %267 = dma.done %s260, 128
        $region44: #{tpu_custom_call.1} parent=35 // pred_fallthru
          _
        %s268 = sand.u32 %s27, 1
        %s269 = scalar_lea.sflag [#allocation6], %s268
        %s270 = sand.u32 %s87, 1
        %s271 = smul.addr %s270, 8
        %s272 = scalar_lea.vmem [#allocation7], %s271
        // Predicated region
        $region45: #{tpu_custom_call.1} parent=35 // pred_check
          %p273 = pneg %p100
        $region46: #{tpu_custom_call.1} parent=35 // pred_check_branch
          %275 = sbr.rel (%p273) target = $region48
        $region47: #{tpu_custom_call.1} parent=35 // pred_region
          %276 = dma.done %s269, 128
        $region48: #{tpu_custom_call.1} parent=35 // pred_fallthru
          _
        %s277 = sand.u32 %s113, 1
        %s278 = scalar_lea.sflag [#allocation9], %s277
        %s279 = sand.u32 %s113, 1
        %s280 = smul.addr %s279, 8
        %s281 = scalar_lea.vmem [#allocation8], %s280
        // Predicated region
        $region49: #{tpu_custom_call.1} parent=35 // pred_check
          %p282 = pneg %p126
        $region50: #{tpu_custom_call.1} parent=35 // pred_check_branch
          %284 = sbr.rel (%p282) target = $region52
        $region51: #{tpu_custom_call.1} parent=35 // pred_region
          %285 = dma.done %s278, 128
        $region52: #{tpu_custom_call.1} parent=35 // pred_fallthru
          _
        %s286 = sand.u32 %s35, 1
        %s287 = scalar_lea.sflag [#allocation3], %s286
        %s288 = sand.u32 %s35, 1
        %s289 = smul.addr %s288, 8
        %s290 = scalar_lea.vmem [#allocation2], %s289
        %p291 = pneg %p48
        %p292 = pneg %p45
        %s293 = sand.u32 %s27, 1
        %s294 = scalar_lea.sflag [#allocation6], %s293
        %s295 = sand.u32 %s61, 1
        %s296 = smul.addr %s295, 8
        %s297 = scalar_lea.vmem [#allocation5], %s296
        %p298 = pneg %p74
        %p299 = pneg %p71
        %s300 = sand.u32 %s27, 1
        %s301 = scalar_lea.sflag [#allocation6], %s300
        %s302 = sand.u32 %s87, 1
        %s303 = smul.addr %s302, 8
        %s304 = scalar_lea.vmem [#allocation7], %s303
        %p305 = pneg %p100
        %p306 = pneg %p97
        %s307 = sand.u32 %s113, 1
        %s308 = scalar_lea.sflag [#allocation9], %s307
        %s309 = sand.u32 %s113, 1
        %s310 = smul.addr %s309, 8
        %s311 = scalar_lea.vmem [#allocation8], %s310
        %p312 = pneg %p126
        %p313 = pneg %p123
        %p314 = pneg %p152
        %p315 = pneg %p149
        %s316 = sand.u32 %s139, 1
        %s317 = scalar_lea.sflag [#allocation4], %s316
        %s318 = sand.u32 %s139, 1
        %s319 = smul.addr %s318, 24
        %s320 = scalar_lea.vmem [#allocation10], %s319
        %v321 = vld [vmem:[%s254] sm:$0xff]
        %v322 = vld [vmem:[%s263] sm:$0xff]
        %v323 = vand.u32 2147483647, %v321
        %v324 = vsub.f32 0.0, %v323
        %v325 = vmul.f32 %v324, 1.442695
        %v326 = vpow.pop %v325
        %v327 = vadd.f32 %v326, 1.0
        %v328 = vlog2.pop %v327
        %v329 = vmul.f32 %v328, 0.6931472
        %v330 = vmul.f32 -0.5, %v326
        %v331 = vadd.f32 %v330, 1.0
        %v332 = vmul.f32 %v331, %v326
        %v333 = vand.u32 2147483647, %v326
        %vm334 = vcmp.lt.f32.partialorder %v333, 0.0004427343
        %v335 = vsel %vm334, %v332, %v329
        %v336 = vmin.f32 %v321, 0.0
        %v337 = vsub.f32 %v336, %v335
        %v338 = vsub.f32 %v337, %v321
        %v339 = vsub.f32 1.0, %v322
        %v340 = vmul.f32 %v322, %v337
        %v341 = vmul.f32 %v339, %v338
        %v342 = vadd.f32 %v340, %v341
        %v343 = vld [vmem:[%s272] sm:$0xff]
        %v344 = vld [vmem:[%s281] sm:$0xff]
        %v345 = vsub.f32 0.5, %v322
        %v346 = vadd.f32 %v345, %v343
        %v347 = vadd.f32 %v344, 0.125
        %v348 = vmul.f32 %v321, %v347
        %v349 = vadd.f32 %v346, %v348
        %v350 = vmul.f32 %v321, %v349
        %v351 = vadd.f32 %v350, 0.6931472
        %v352 = vmax.f32 %v337, -100.0
        %v353 = vmul.f32 %v322, %v352
        %v354 = vmax.f32 %v338, -100.0
        %v355 = vmul.f32 %v339, %v354
        %v356 = vadd.f32 %v353, %v355
        %v357 = vsub.f32 0.0, %v356
        %v358 = vadd.f32 %v351, 0.0
        %359 = vst [vmem:[%s320] sm:$0xff] %v358
        %v360 = vadd.f32 %v342, 0.0
        %s361 = scalar_lea.vmem %s320, 8 [#allocation10]
        %362 = vst [vmem:[%s361] sm:$0xff] %v360
        %v363 = vadd.f32 %v357, 0.0
        %s364 = scalar_lea.vmem %s320, 16 [#allocation10]
        %365 = vst [vmem:[%s364] sm:$0xff] %v363
        %s366 = sand.u32 %s139, 1
        %s367 = scalar_lea.sflag [#allocation4], %s366
        %s368 = sand.u32 %s139, 1
        %s369 = smul.addr %s368, 24
        %s370 = scalar_lea.vmem [#allocation10], %s369
        // Predicated region
        $region53: #{tpu_custom_call.1} parent=35 // pred_check
          %p371 = pneg %p149
        $region54: #{tpu_custom_call.1} parent=35 // pred_check_branch
          %373 = sbr.rel (%p371) target = $region56
        $region55: #{tpu_custom_call.1} parent=35 // pred_region
          %s375 = ssub.s32 384, 384
          %376 = vsyncadd %s367, %s375
          %s377 = smul.addr %s27, 3
          %s378 = smul.addr %s377, 128
          %s379 = scalar_lea.hbm %s4, %s378
          %s380 = sshll.u32 %s370, 4
          %s381 = int_to_ptr.vmem [resolvable:$true] %s380
          %386 = dma.vmem_to_hbm [thread:$0]  %s381, 384, %s379, %s367, 128, 128, 8
        $region56: #{tpu_custom_call.1} parent=35 // pred_fallthru
          _
      $region36: #{tpu_custom_call.1} parent=5 // pred_fallthru
        _
      %p387 = scmp.le.s32.totalorder 2, %s22
      // Predicated region
      $region57: #{tpu_custom_call.1} parent=5 // pred_check
        %p388 = pneg %p387
      $region58: #{tpu_custom_call.1} parent=5 // pred_check_branch
        %390 = sbr.rel (%p388) target = $region60
      $region59: #{tpu_custom_call.1} parent=5 // pred_region
        %s391 = ssub.s32 %s22, 2
        // Predicated region
        $region61: #{tpu_custom_call.1} parent=59 // pred_check
          %p392 = pneg %p155
        $region62: #{tpu_custom_call.1} parent=59 // pred_check_branch
          %394 = sbr.rel (%p392) target = $region64
        $region63: #{tpu_custom_call.1} parent=59 // pred_region
          %s395 = sand.u32 %s140, 1
          %s396 = scalar_lea.sflag [#allocation4], %s395
          %s397 = sand.u32 %s140, 1
          %s398 = smul.addr %s397, 24
          %s399 = scalar_lea.vmem [#allocation10], %s398
          %400 = dma.done %s396, 384
        $region64: #{tpu_custom_call.1} parent=59 // pred_fallthru
          _
      $region60: #{tpu_custom_call.1} parent=5 // pred_fallthru
        _
    $region6: #{tpu_custom_call.1} parent=1 // loop_footer
      %s26 = sadd.s32 1, %s22
    $region7: #{tpu_custom_call.1} parent=1 // loop_footer_branch
      %21 = sbr.rel target = $region3
    $region8: #{tpu_custom_call.1} parent=1 // loop_exit
      _
    %401 = vsyncpa [#allocation3], 1
    %s402 = scalar_lea.sflag [#allocation3], 1
    %403 = vsyncpa %s402, 1
    %404 = vsyncpa [#allocation6], 1
    %s405 = scalar_lea.sflag [#allocation6], 1
    %406 = vsyncpa %s405, 1
    %407 = vsyncpa [#allocation9], 1
    %s408 = scalar_lea.sflag [#allocation9], 1
    %409 = vsyncpa %s408, 1
    %410 = vsyncpa [#allocation4], 1
    %s411 = scalar_lea.sflag [#allocation4], 1
    %412 = vsyncpa %s411, 1

</llo_original>
